<compile_context>
chip_gen: v7x
topology: tpu7x:2x2x1
jax: 0.10.0
libtpu: 0.0.40
codegen_flags: <defaults>
</compile_context>

<pallas_src>
import jax
import jax.numpy as jnp
from jax.experimental import pallas as pl
from jax.experimental.pallas import tpu as pltpu


# ----------------------------------------------------------------------------
# Helpers
# ----------------------------------------------------------------------------
def _round_up(n, m):
    return ((n + m - 1) // m) * m


def _pad2(a, rows, cols):
    return jnp.pad(a, ((0, rows - a.shape[0]), (0, cols - a.shape[1])))


def _vmem_capacity_bytes():
    try:
        return int(pltpu.get_tpu_info().vmem_capacity_bytes)
    except Exception:
        return 64 << 20  # conservative default (v7x per-TensorCore VMEM)


# ----------------------------------------------------------------------------
# Pallas kernel (static number of layers, static has_weights)
# ----------------------------------------------------------------------------
def _make_kernel(num_layers: int, has_weights: bool):
    def kernel(*refs):
        # refs: x, W_0..W_{L-1}, shifts(L, Hp), w_out, b_out, [wts], out
        x_ref = refs[0]
        w_refs = refs[1:1 + num_layers]
        shifts_ref = refs[1 + num_layers]
        w_out_ref = refs[2 + num_layers]
        b_out_ref = refs[3 + num_layers]
        nxt = 4 + num_layers
        wts_ref = refs[nxt] if has_weights else None
        out_ref = refs[nxt + 1] if has_weights else refs[nxt]

        compute_dtype = w_out_ref.dtype  # matmul operand dtype (bf16 or f32)

        # x arrives in its original (narrow, unpadded) dtype; cast in VMEM.
        h = x_ref[...].astype(compute_dtype)
        for i in range(num_layers):
            # Linear with BatchNorm folded in; f32 accumulation on the MXU.
            z = jnp.dot(h, w_refs[i][...], preferred_element_type=jnp.float32)
            z = z + shifts_ref[i:i + 1, :]            # (1, Hp) broadcast
            # ReLU in f32 on the VPU; one cast for the next MXU operand.
            h = jnp.maximum(z, 0.0).astype(compute_dtype)
            # Dropout: identity in eval mode.

        logits = jnp.dot(h, w_out_ref[...], preferred_element_type=jnp.float32)
        logits = logits + b_out_ref[...]
        out = jax.nn.sigmoid(logits)
        if has_weights:
            out = out * wts_ref[...]                  # (tile_b, 1) broadcast
        out_ref[...] = out.astype(out_ref.dtype)

    return kernel


# ----------------------------------------------------------------------------
# One-time parameter preparation (BN fold + pad + cast) — hoisted out of the
# per-call path.  Call once, reuse the result for every forward pass.
# ----------------------------------------------------------------------------
def prepare_params(params, matmul_dtype=jnp.bfloat16, eps=1e-5):
    hidden_layers = params["hidden"]
    w_out, b_out = params["out"]
    num_layers = len(hidden_layers)
    in_features = hidden_layers[0][0].shape[0]
    num_hidden = hidden_layers[0][0].shape[1]
    out_features = w_out.shape[1]
    p_h = _round_up(num_hidden, 128)   # hidden dim lane-padded (VMEM-resident)

    # Fold BatchNorm (eval) into the linear layer:
    #   relu((h@W + b)*scale + shift) == relu(h @ (W*scale) + (b*scale + shift))
    w_list, shift_list = [], []
    prev_rows = in_features           # first W keeps its true input dim
    for (w, b, gamma, beta, r_mean, r_var) in hidden_layers:
        scale = gamma / jnp.sqrt(r_var + eps)
        shift = beta - r_mean * scale
        w_fold = w * scale[None, :]
        shift_fold = b * scale + shift
        w_list.append(_pad2(w_fold, prev_rows, p_h).astype(matmul_dtype))
        shift_list.append(jnp.pad(shift_fold, (0, p_h - num_hidden)))
        prev_rows = p_h
    shifts = jnp.stack(shift_list, axis=0).astype(jnp.float32)     # (L, p_h)

    w_out_p = _pad2(w_out, p_h, out_features).astype(matmul_dtype)  # narrow N
    b_out_p = b_out.reshape(1, out_features).astype(jnp.float32)

    return {
        "w_list": w_list,
        "shifts": shifts,
        "w_out": w_out_p,
        "b_out": b_out_p,
        "num_layers": num_layers,
        "in_features": in_features,
        "out_features": out_features,
        "p_h": p_h,
        "matmul_dtype": jnp.dtype(matmul_dtype),
    }


# ----------------------------------------------------------------------------
# Forward wrapper
# ----------------------------------------------------------------------------
def tabular_forward(x, params, weights=None, *, matmul_dtype=jnp.bfloat16,
                    tile_b=2048):
    """Fused TabularModel forward pass.

    `params` is either the raw dict ({"hidden": [...], "out": (W,b)}) or the
    output of prepare_params() (preferred: prepares the weights only once).
    """
    if "w_list" not in params:            # raw params -> prepare on the fly
        params = prepare_params(params, matmul_dtype=matmul_dtype)

    w_list = params["w_list"]
    shifts = params["shifts"]
    w_out_p = params["w_out"]
    b_out_p = params["b_out"]
    num_layers = params["num_layers"]
    in_features = params["in_features"]
    out_features = params["out_features"]
    p_h = params["p_h"]

    batch = x.shape[0]
    assert x.shape[1] == in_features
    has_weights = weights is not None

    # ---- batch tiling ------------------------------------------------------
    tile_bsz = max(8, _round_up(min(int(tile_b), _round_up(batch, 8)), 8))
    # Keep both v7x TensorCores busy: if one tile would cover a large batch,
    # split it so the (parallel) grid has at least 2 steps.
    if pl.cdiv(batch, tile_bsz) == 1 and batch >= 512:
        tile_bsz = _round_up(pl.cdiv(batch, 2), 8)

    # ---- VMEM budget (generation-aware) & tile auto-shrink ------------------
    def _nbytes(a):
        return int(a.size) * a.dtype.itemsize

    resident = (sum(_nbytes(a) for a in w_list) + _nbytes(shifts)
                + _nbytes(w_out_p) + _nbytes(b_out_p))

    capacity = _vmem_capacity_bytes()
    budget = max(min(capacity - (8 << 20), 100 << 20), 16 << 20)

    def _footprint(tb):
        io = 2 * (tb * in_features * x.dtype.itemsize      # x (double-buffered)
                  + tb * out_features * 4                   # out
                  + (tb * 4 if has_weights else 0))         # per-sample weights
        work = tb * p_h * 16 + tb * _round_up(in_features, 128) * 8
        return 2 * resident + io + work                     # worst-case buffering

    while tile_bsz > 8 and _footprint(tile_bsz) > budget:
        tile_bsz = max(8, _round_up(tile_bsz // 2, 8))

    grid_steps = pl.cdiv(batch, tile_bsz)   # ragged tail handled by Pallas

    # ---- inputs (no padding / casting passes over x in HBM) -----------------
    inputs = [x] + list(w_list) + [shifts, w_out_p, b_out_p]
    if has_weights:
        inputs.append(weights.reshape(batch, 1).astype(jnp.float32))

    def _build_specs(single_buffer_resident):
        res_kw = ({"pipeline_mode": pl.Buffered(1)}
                  if single_buffer_resident else {})
        in_specs = [pl.BlockSpec((tile_bsz, in_features), lambda i: (i, 0))]
        in_specs += [pl.BlockSpec(w.shape, lambda i: (0, 0), **res_kw)
                     for w in w_list]
        in_specs += [
            pl.BlockSpec(shifts.shape, lambda i: (0, 0), **res_kw),
            pl.BlockSpec(w_out_p.shape, lambda i: (0, 0), **res_kw),
            pl.BlockSpec(b_out_p.shape, lambda i: (0, 0), **res_kw),
        ]
        if has_weights:
            in_specs.append(pl.BlockSpec((tile_bsz, 1), lambda i: (i, 0)))
        out_spec = pl.BlockSpec((tile_bsz, out_features), lambda i: (i, 0))
        return in_specs, out_spec

    def _run(single_buffer_resident):
        in_specs, out_spec = _build_specs(single_buffer_resident)
        return pl.pallas_call(
            _make_kernel(num_layers, has_weights),
            out_shape=jax.ShapeDtypeStruct((batch, out_features), jnp.float32),
            grid=(grid_steps,),
            in_specs=in_specs,
            out_specs=out_spec,
            compiler_params=pltpu.CompilerParams(
                dimension_semantics=("parallel",),
                vmem_limit_bytes=int(budget),
            ),
        )(*inputs)

    try:
        # Single-buffer the grid-invariant (resident) operands.
        return _run(True)
    except Exception:
        # Fallback: default double-buffering if Buffered(1) is rejected.
        return _run(False)


# ----------------------------------------------------------------------------
# Deterministic parameter construction (synthetic, PyTorch-shaped)
# ----------------------------------------------------------------------------
def init_params(key, input_size, output_size, num_layers, num_hidden):
    params = {"hidden": [], "out": None}
    in_f = input_size
    for _ in range(num_layers):
        key, k_w, k_b, k_g, k_bt = jax.random.split(key, 5)
        bound = 1.0 / jnp.sqrt(in_f)
        w = jax.random.uniform(k_w, (in_f, num_hidden), jnp.float32, -bound, bound)
        b = jax.random.uniform(k_b, (num_hidden,), jnp.float32, -bound, bound)
        gamma = 1.0 + 0.1 * jax.random.normal(k_g, (num_hidden,), jnp.float32)
        beta = 0.1 * jax.random.normal(k_bt, (num_hidden,), jnp.float32)
        r_mean = jnp.zeros((num_hidden,), jnp.float32)
        r_var = jnp.ones((num_hidden,), jnp.float32)
        params["hidden"].append((w, b, gamma, beta, r_mean, r_var))
        in_f = num_hidden

    key, k_w, k_b = jax.random.split(key, 3)
    bound = 1.0 / jnp.sqrt(num_hidden)
    w_out = jax.random.uniform(k_w, (num_hidden, output_size), jnp.float32,
                               -bound, bound)
    b_out = jax.random.uniform(k_b, (output_size,), jnp.float32, -bound, bound)
    params["out"] = (w_out, b_out)
    return params


# Pure-JAX reference for correctness checks (f32 path is the bit-faithful one).
def reference_forward(x, params, weights=None):
    eps = 1e-5
    h = x
    for (w, b, gamma, beta, r_mean, r_var) in params["hidden"]:
        h = h @ w + b
        h = (h - r_mean) / jnp.sqrt(r_var + eps) * gamma + beta
        h = jnp.maximum(h, 0.0)
    w_out, b_out = params["out"]
    out = jax.nn.sigmoid(h @ w_out + b_out)
    if weights is not None:
        out = out * weights.reshape(x.shape[0], 1)
    return out


if __name__ == "__main__":
    # Small config consistent with the module's constructor.
    input_size = 16
    output_size = 8
    num_layers = 2
    num_hidden = 32
    batch = 8

    key = jax.random.PRNGKey(0)
    key, k_x, k_w = jax.random.split(key, 3)
    x = jax.random.normal(k_x, (batch, input_size), jnp.float32)
    sample_weights = jax.random.uniform(k_w, (batch,), jnp.float32, 0.5, 1.5)

    params = init_params(key, input_size, output_size, num_layers, num_hidden)
    ref = reference_forward(x, params, weights=sample_weights)

    # Prepare (BN fold + pad + cast) once per matmul dtype and reuse.
    prepared_f32 = prepare_params(params, matmul_dtype=jnp.float32)
    prepared_bf16 = prepare_params(params, matmul_dtype=jnp.bfloat16)

    # 1) f32 matmul path: tight tolerance vs the pure-JAX reference.
    out_f32 = jax.block_until_ready(
        tabular_forward(x, prepared_f32, weights=sample_weights))
    assert out_f32.shape == (batch, output_size)
    assert jnp.max(jnp.abs(out_f32 - ref)) < 1e-4

    # 2) bf16 matmul path (default, MXU-native on v5e/v6e/v7x): loose tolerance.
    out_bf16 = jax.block_until_ready(
        tabular_forward(x, prepared_bf16, weights=sample_weights))
    assert jnp.max(jnp.abs(out_bf16 - ref)) < 5e-2

    # 3) weights=None (predict()) path, raw (unprepared) params, multi-step
    #    grid with a ragged batch tail (batch=200, tile_b=128 -> 2 grid steps).
    key, k_x2 = jax.random.split(key)
    x2 = jax.random.normal(k_x2, (200, input_size), jnp.float32)
    out2 = jax.block_until_ready(
        tabular_forward(x2, params, weights=None,
                        matmul_dtype=jnp.float32, tile_b=128))
    ref2 = reference_forward(x2, params, weights=None)
    assert out2.shape == (200, output_size)
    assert jnp.max(jnp.abs(out2 - ref2)) < 1e-4

    print("KERNEL_OK")
</pallas_src>

<mosaic_0001>
module attributes {stable_mosaic.version = 11 : i64} {
  func.func @kernel(%arg0: i32, %arg1: memref<8x16xf32, #tpu.memory_space<vmem>>, %arg2: memref<16x128xf32, #tpu.memory_space<vmem>>, %arg3: memref<128x128xf32, #tpu.memory_space<vmem>>, %arg4: memref<2x128xf32, #tpu.memory_space<vmem>>, %arg5: memref<128x8xf32, #tpu.memory_space<vmem>>, %arg6: memref<1x8xf32, #tpu.memory_space<vmem>>, %arg7: memref<8x1xf32, #tpu.memory_space<vmem>>, %arg8: memref<8x8xf32, #tpu.memory_space<vmem>>) attributes {dimension_semantics = [#tpu.dimension_semantics<parallel>], iteration_bounds = array<i64: 1>, scalar_prefetch = 0 : i64, scratch_operands = 0 : i64, tpu.core_type = #tpu.core_type<tc>, window_params = [{transform_indices = @transform_0, window_bounds = array<i64: 8, 16>}, {pipeline_mode = #tpu.pipeline_mode<synchronous>, transform_indices = @transform_1, window_bounds = array<i64: 16, 128>}, {pipeline_mode = #tpu.pipeline_mode<synchronous>, transform_indices = @transform_2, window_bounds = array<i64: 128, 128>}, {pipeline_mode = #tpu.pipeline_mode<synchronous>, transform_indices = @transform_3, window_bounds = array<i64: 2, 128>}, {pipeline_mode = #tpu.pipeline_mode<synchronous>, transform_indices = @transform_4, window_bounds = array<i64: 128, 8>}, {pipeline_mode = #tpu.pipeline_mode<synchronous>, transform_indices = @transform_5, window_bounds = array<i64: 1, 8>}, {transform_indices = @transform_6, window_bounds = array<i64: 8, 1>}, {transform_indices = @transform_7, window_bounds = array<i64: 8, 8>}]} {
    %c0 = arith.constant 0 : index
    %c0_0 = arith.constant 0 : index
    %0 = vector.load %arg1[%c0, %c0_0] : memref<8x16xf32, #tpu.memory_space<vmem>>, vector<8x16xf32>
    %c0_1 = arith.constant 0 : index
    %c0_2 = arith.constant 0 : index
    %1 = vector.load %arg2[%c0_1, %c0_2] : memref<16x128xf32, #tpu.memory_space<vmem>>, vector<16x128xf32>
    %cst = arith.constant dense<0.000000e+00> : vector<8x128xf32>
    %2 = tpu.matmul %0, %1, %cst {dimension_numbers = #tpu.dot_dimension_numbers<[1], [0], [0], [1], [0, 0, 1, 1], [], []>} : vector<8x16xf32>, vector<16x128xf32>, vector<8x128xf32> -> vector<8x128xf32>
    %c0_3 = arith.constant 0 : index
    %c0_4 = arith.constant 0 : index
    %3 = vector.load %arg4[%c0_3, %c0_4] : memref<2x128xf32, #tpu.memory_space<vmem>>, vector<1x128xf32>
    %4 = vector.broadcast %3 : vector<1x128xf32> to vector<8x128xf32>
    %5 = arith.addf %2, %4 : vector<8x128xf32>
    %cst_5 = arith.constant 0.000000e+00 : f32
    %6 = vector.broadcast %cst_5 : f32 to vector<8x128xf32>
    %7 = arith.maximumf %5, %6 : vector<8x128xf32>
    %c0_6 = arith.constant 0 : index
    %c0_7 = arith.constant 0 : index
    %8 = vector.load %arg3[%c0_6, %c0_7] : memref<128x128xf32, #tpu.memory_space<vmem>>, vector<128x128xf32>
    %cst_8 = arith.constant dense<0.000000e+00> : vector<8x128xf32>
    %9 = tpu.matmul %7, %8, %cst_8 {dimension_numbers = #tpu.dot_dimension_numbers<[1], [0], [0], [1], [0, 0, 1, 1], [], []>} : vector<8x128xf32>, vector<128x128xf32>, vector<8x128xf32> -> vector<8x128xf32>
    %c1 = arith.constant 1 : index
    %c0_9 = arith.constant 0 : index
    %10 = vector.load %arg4[%c1, %c0_9] : memref<2x128xf32, #tpu.memory_space<vmem>>, vector<1x128xf32>
    %11 = vector.broadcast %10 : vector<1x128xf32> to vector<8x128xf32>
    %12 = arith.addf %9, %11 : vector<8x128xf32>
    %cst_10 = arith.constant 0.000000e+00 : f32
    %13 = vector.broadcast %cst_10 : f32 to vector<8x128xf32>
    %14 = arith.maximumf %12, %13 : vector<8x128xf32>
    %c0_11 = arith.constant 0 : index
    %c0_12 = arith.constant 0 : index
    %15 = vector.load %arg5[%c0_11, %c0_12] : memref<128x8xf32, #tpu.memory_space<vmem>>, vector<128x8xf32>
    %cst_13 = arith.constant dense<0.000000e+00> : vector<8x8xf32>
    %16 = tpu.matmul %14, %15, %cst_13 {dimension_numbers = #tpu.dot_dimension_numbers<[1], [0], [0], [1], [0, 0, 1, 1], [], []>} : vector<8x128xf32>, vector<128x8xf32>, vector<8x8xf32> -> vector<8x8xf32>
    %c0_14 = arith.constant 0 : index
    %c0_15 = arith.constant 0 : index
    %17 = vector.load %arg6[%c0_14, %c0_15] : memref<1x8xf32, #tpu.memory_space<vmem>>, vector<1x8xf32>
    %18 = vector.broadcast %17 : vector<1x8xf32> to vector<8x8xf32>
    %19 = arith.addf %16, %18 : vector<8x8xf32>
    %20 = arith.negf %19 : vector<8x8xf32>
    %21 = math.exp %20 : vector<8x8xf32>
    %cst_16 = arith.constant 1.000000e+00 : f32
    %22 = vector.broadcast %cst_16 : f32 to vector<8x8xf32>
    %23 = arith.addf %22, %21 : vector<8x8xf32>
    %24 = arith.divf %22, %23 : vector<8x8xf32>
    %c0_17 = arith.constant 0 : index
    %c0_18 = arith.constant 0 : index
    %25 = vector.load %arg7[%c0_17, %c0_18] : memref<8x1xf32, #tpu.memory_space<vmem>>, vector<8x1xf32>
    %26 = vector.broadcast %25 : vector<8x1xf32> to vector<8x8xf32>
    %27 = arith.mulf %24, %26 : vector<8x8xf32>
    %c0_19 = arith.constant 0 : index
    %c0_20 = arith.constant 0 : index
    %28 = vector.load %arg8[%c0_19, %c0_20] : memref<8x8xf32, #tpu.memory_space<vmem>>, vector<8x8xf32>
    tpu.vector_store %arg8[%c0_19, %c0_20], %27 {strides = array<i32>} : memref<8x8xf32, #tpu.memory_space<vmem>>, vector<8x8xf32>,
    return
  }
  func.func @transform_0(%arg0: i32) -> (i32, i32) {
    %c0_i32 = arith.constant 0 : i32
    %c0_i32_0 = arith.constant 0 : i32
    return %arg0, %c0_i32 : i32, i32
  }
  func.func @transform_1(%arg0: i32) -> (i32, i32) {
    %c0_i32 = arith.constant 0 : i32
    %c0_i32_0 = arith.constant 0 : i32
    %c0_i32_1 = arith.constant 0 : i32
    return %c0_i32, %c0_i32_0 : i32, i32
  }
  func.func @transform_2(%arg0: i32) -> (i32, i32) {
    %c0_i32 = arith.constant 0 : i32
    %c0_i32_0 = arith.constant 0 : i32
    %c0_i32_1 = arith.constant 0 : i32
    return %c0_i32, %c0_i32_0 : i32, i32
  }
  func.func @transform_3(%arg0: i32) -> (i32, i32) {
    %c0_i32 = arith.constant 0 : i32
    %c0_i32_0 = arith.constant 0 : i32
    %c0_i32_1 = arith.constant 0 : i32
    return %c0_i32, %c0_i32_0 : i32, i32
  }
  func.func @transform_4(%arg0: i32) -> (i32, i32) {
    %c0_i32 = arith.constant 0 : i32
    %c0_i32_0 = arith.constant 0 : i32
    %c0_i32_1 = arith.constant 0 : i32
    return %c0_i32, %c0_i32_0 : i32, i32
  }
  func.func @transform_5(%arg0: i32) -> (i32, i32) {
    %c0_i32 = arith.constant 0 : i32
    %c0_i32_0 = arith.constant 0 : i32
    %c0_i32_1 = arith.constant 0 : i32
    return %c0_i32, %c0_i32_0 : i32, i32
  }
  func.func @transform_6(%arg0: i32) -> (i32, i32) {
    %c0_i32 = arith.constant 0 : i32
    %c0_i32_0 = arith.constant 0 : i32
    return %arg0, %c0_i32 : i32, i32
  }
  func.func @transform_7(%arg0: i32) -> (i32, i32) {
    %c0_i32 = arith.constant 0 : i32
    %c0_i32_0 = arith.constant 0 : i32
    return %arg0, %c0_i32 : i32, i32
  }
}

module attributes {stable_mosaic.version = 11 : i64} {
  func.func @kernel(%arg0: i32, %arg1: memref<8x16xf32, #tpu.memory_space<vmem>>, %arg2: memref<16x128xf32, #tpu.memory_space<vmem>>, %arg3: memref<128x128xf32, #tpu.memory_space<vmem>>, %arg4: memref<2x128xf32, #tpu.memory_space<vmem>>, %arg5: memref<128x8xf32, #tpu.memory_space<vmem>>, %arg6: memref<1x8xf32, #tpu.memory_space<vmem>>, %arg7: memref<8x1xf32, #tpu.memory_space<vmem>>, %arg8: memref<8x8xf32, #tpu.memory_space<vmem>>) attributes {dimension_semantics = [#tpu.dimension_semantics<parallel>], iteration_bounds = array<i64: 1>, scalar_prefetch = 0 : i64, scratch_operands = 0 : i64, tpu.core_type = #tpu.core_type<tc>, window_params = [{transform_indices = @transform_0, window_bounds = array<i64: 8, 16>}, {pipeline_mode = #tpu.pipeline_mode<synchronous>, transform_indices = @transform_1, window_bounds = array<i64: 16, 128>}, {pipeline_mode = #tpu.pipeline_mode<synchronous>, transform_indices = @transform_2, window_bounds = array<i64: 128, 128>}, {pipeline_mode = #tpu.pipeline_mode<synchronous>, transform_indices = @transform_3, window_bounds = array<i64: 2, 128>}, {pipeline_mode = #tpu.pipeline_mode<synchronous>, transform_indices = @transform_4, window_bounds = array<i64: 128, 8>}, {pipeline_mode = #tpu.pipeline_mode<synchronous>, transform_indices = @transform_5, window_bounds = array<i64: 1, 8>}, {transform_indices = @transform_6, window_bounds = array<i64: 8, 1>}, {transform_indices = @transform_7, window_bounds = array<i64: 8, 8>}]} {
    %c0 = arith.constant 0 : index
    %c0_0 = arith.constant 0 : index
    %0 = vector.load %arg1[%c0, %c0_0] : memref<8x16xf32, #tpu.memory_space<vmem>>, vector<8x16xf32>
    %c0_1 = arith.constant 0 : index
    %c0_2 = arith.constant 0 : index
    %1 = vector.load %arg2[%c0_1, %c0_2] : memref<16x128xf32, #tpu.memory_space<vmem>>, vector<16x128xf32>
    %cst = arith.constant dense<0.000000e+00> : vector<8x128xf32>
    %2 = tpu.matmul %0, %1, %cst {dimension_numbers = #tpu.dot_dimension_numbers<[1], [0], [0], [1], [0, 0, 1, 1], [], []>} : vector<8x16xf32>, vector<16x128xf32>, vector<8x128xf32> -> vector<8x128xf32>
    %c0_3 = arith.constant 0 : index
    %c0_4 = arith.constant 0 : index
    %3 = vector.load %arg4[%c0_3, %c0_4] : memref<2x128xf32, #tpu.memory_space<vmem>>, vector<1x128xf32>
    %4 = vector.broadcast %3 : vector<1x128xf32> to vector<8x128xf32>
    %5 = arith.addf %2, %4 : vector<8x128xf32>
    %cst_5 = arith.constant 0.000000e+00 : f32
    %6 = vector.broadcast %cst_5 : f32 to vector<8x128xf32>
    %7 = arith.maximumf %5, %6 : vector<8x128xf32>
    %c0_6 = arith.constant 0 : index
    %c0_7 = arith.constant 0 : index
    %8 = vector.load %arg3[%c0_6, %c0_7] : memref<128x128xf32, #tpu.memory_space<vmem>>, vector<128x128xf32>
    %cst_8 = arith.constant dense<0.000000e+00> : vector<8x128xf32>
    %9 = tpu.matmul %7, %8, %cst_8 {dimension_numbers = #tpu.dot_dimension_numbers<[1], [0], [0], [1], [0, 0, 1, 1], [], []>} : vector<8x128xf32>, vector<128x128xf32>, vector<8x128xf32> -> vector<8x128xf32>
    %c1 = arith.constant 1 : index
    %c0_9 = arith.constant 0 : index
    %10 = vector.load %arg4[%c1, %c0_9] : memref<2x128xf32, #tpu.memory_space<vmem>>, vector<1x128xf32>
    %11 = vector.broadcast %10 : vector<1x128xf32> to vector<8x128xf32>
    %12 = arith.addf %9, %11 : vector<8x128xf32>
    %cst_10 = arith.constant 0.000000e+00 : f32
    %13 = vector.broadcast %cst_10 : f32 to vector<8x128xf32>
    %14 = arith.maximumf %12, %13 : vector<8x128xf32>
    %c0_11 = arith.constant 0 : index
    %c0_12 = arith.constant 0 : index
    %15 = vector.load %arg5[%c0_11, %c0_12] : memref<128x8xf32, #tpu.memory_space<vmem>>, vector<128x8xf32>
    %cst_13 = arith.constant dense<0.000000e+00> : vector<8x8xf32>
    %16 = tpu.matmul %14, %15, %cst_13 {dimension_numbers = #tpu.dot_dimension_numbers<[1], [0], [0], [1], [0, 0, 1, 1], [], []>} : vector<8x128xf32>, vector<128x8xf32>, vector<8x8xf32> -> vector<8x8xf32>
    %c0_14 = arith.constant 0 : index
    %c0_15 = arith.constant 0 : index
    %17 = vector.load %arg6[%c0_14, %c0_15] : memref<1x8xf32, #tpu.memory_space<vmem>>, vector<1x8xf32>
    %18 = vector.broadcast %17 : vector<1x8xf32> to vector<8x8xf32>
    %19 = arith.addf %16, %18 : vector<8x8xf32>
    %20 = arith.negf %19 : vector<8x8xf32>
    %21 = math.exp %20 : vector<8x8xf32>
    %cst_16 = arith.constant 1.000000e+00 : f32
    %22 = vector.broadcast %cst_16 : f32 to vector<8x8xf32>
    %23 = arith.addf %22, %21 : vector<8x8xf32>
    %24 = arith.divf %22, %23 : vector<8x8xf32>
    %c0_17 = arith.constant 0 : index
    %c0_18 = arith.constant 0 : index
    %25 = vector.load %arg7[%c0_17, %c0_18] : memref<8x1xf32, #tpu.memory_space<vmem>>, vector<8x1xf32>
    %26 = vector.broadcast %25 : vector<8x1xf32> to vector<8x8xf32>
    %27 = arith.mulf %24, %26 : vector<8x8xf32>
    %c0_19 = arith.constant 0 : index
    %c0_20 = arith.constant 0 : index
    %28 = vector.load %arg8[%c0_19, %c0_20] : memref<8x8xf32, #tpu.memory_space<vmem>>, vector<8x8xf32>
    tpu.vector_store %arg8[%c0_19, %c0_20], %27 {strides = array<i32>} : memref<8x8xf32, #tpu.memory_space<vmem>>, vector<8x8xf32>,
    return
  }
  func.func @transform_0(%arg0: i32) -> (i32, i32) {
    %c0_i32 = arith.constant 0 : i32
    %c0_i32_0 = arith.constant 0 : i32
    return %arg0, %c0_i32 : i32, i32
  }
  func.func @transform_1(%arg0: i32) -> (i32, i32) {
    %c0_i32 = arith.constant 0 : i32
    %c0_i32_0 = arith.constant 0 : i32
    %c0_i32_1 = arith.constant 0 : i32
    return %c0_i32, %c0_i32_0 : i32, i32
  }
  func.func @transform_2(%arg0: i32) -> (i32, i32) {
    %c0_i32 = arith.constant 0 : i32
    %c0_i32_0 = arith.constant 0 : i32
    %c0_i32_1 = arith.constant 0 : i32
    return %c0_i32, %c0_i32_0 : i32, i32
  }
  func.func @transform_3(%arg0: i32) -> (i32, i32) {
    %c0_i32 = arith.constant 0 : i32
    %c0_i32_0 = arith.constant 0 : i32
    %c0_i32_1 = arith.constant 0 : i32
    return %c0_i32, %c0_i32_0 : i32, i32
  }
  func.func @transform_4(%arg0: i32) -> (i32, i32) {
    %c0_i32 = arith.constant 0 : i32
    %c0_i32_0 = arith.constant 0 : i32
    %c0_i32_1 = arith.constant 0 : i32
    return %c0_i32, %c0_i32_0 : i32, i32
  }
  func.func @transform_5(%arg0: i32) -> (i32, i32) {
    %c0_i32 = arith.constant 0 : i32
    %c0_i32_0 = arith.constant 0 : i32
    %c0_i32_1 = arith.constant 0 : i32
    return %c0_i32, %c0_i32_0 : i32, i32
  }
  func.func @transform_6(%arg0: i32) -> (i32, i32) {
    %c0_i32 = arith.constant 0 : i32
    %c0_i32_0 = arith.constant 0 : i32
    return %arg0, %c0_i32 : i32, i32
  }
  func.func @transform_7(%arg0: i32) -> (i32, i32) {
    %c0_i32 = arith.constant 0 : i32
    %c0_i32_0 = arith.constant 0 : i32
    return %arg0, %c0_i32 : i32, i32
  }
}

</mosaic_0001>

<llo_original>
// kernel: tpu_custom_call.1
$region0: #{tpu_custom_call.1}
  #allocation0 [shape = 'u32[]', space=smem, size = 0x4, offset = 0x4, fixed_abs, tag = 'smem constant byte address 0x4 - core index']
  #allocation1 [shape = 'u32[144,128]{1,0:T(1,128)}', space=vmem, size = 0x12000, scoped, tag = 'internal scratch']
  %s0 = inlined_call_operand.hbm [shape: f32[8,16], index: 0, kind: input, shape index: {}]
  %s1 = inlined_call_operand.vmem [shape: f32[16,128], index: 1, kind: input, shape index: {}]
  %s2 = inlined_call_operand.vmem [shape: f32[128,128], index: 2, kind: input, shape index: {}]
  %s3 = inlined_call_operand.vmem [shape: f32[2,128], index: 3, kind: input, shape index: {}]
  %s4 = inlined_call_operand.vmem [shape: f32[128,8], index: 4, kind: input, shape index: {}]
  %s5 = inlined_call_operand.vmem [shape: f32[1,8], index: 5, kind: input, shape index: {}]
  %s6 = inlined_call_operand.vmem [shape: f32[8,1], index: 6, kind: input, shape index: {}]
  %s7 = inlined_call_operand.hbm [shape: f32[8,8], index: 7, kind: output, shape index: {}]
  %s8 = sld [smem:[#allocation0]]
  $region42: #{tpu_custom_call.1} parent=0
    _
  %s10 = ssub.s32 1, %s8
  %s11 = scalar_select 0, %s10, %s8
  $region1: #{tpu_custom_call.1} parent=0
    #allocation2 [shape = 'u8[4096]{0}', space=vmem, size = 0x1000, scoped, tag = 'input window, operand 0, single buffered']
    #allocation3 [shape = 's32[1]{0}', space=sflag, size = 0x4, scoped, tag = 'scoped memory for tpu_custom_call.1']
    #allocation4 [shape = 's32[1]{0}', space=sflag, size = 0x4, scoped, tag = 'scoped memory for tpu_custom_call.1']
    #allocation5 [shape = 'u8[4096]{0}', space=vmem, size = 0x1000, scoped, tag = 'output window, operand 0, single buffered']
    %12 = vsyncpa [#allocation3], 0
    %13 = vsyncpa [#allocation4], 0
    // Predicated region
    $region2: #{tpu_custom_call.1} parent=1 // pred_check
      _
    $region3: #{tpu_custom_call.1} parent=1 // pred_check_branch
      %15 = sbr.rel (0) target = $region5
    $region4: #{tpu_custom_call.1} parent=1 // pred_region
      %s17 = ssub.s32 128, 128
      %18 = vsyncadd [#allocation3], %s17
      %s20 = sshll.u32 [#allocation2], 4
      %s21 = int_to_ptr.vmem [resolvable:$true] %s20
      %23 = dma.hbm_to_vmem [thread:$0]  %s0, 128, %s21, [#allocation3]
    $region5: #{tpu_custom_call.1} parent=1 // pred_fallthru
      _
    // Predicated region
    $region6: #{tpu_custom_call.1} parent=1 // pred_check
      _
    $region7: #{tpu_custom_call.1} parent=1 // pred_check_branch
      %25 = sbr.rel (0) target = $region9
    $region8: #{tpu_custom_call.1} parent=1 // pred_region
      _
    $region9: #{tpu_custom_call.1} parent=1 // pred_fallthru
      _
    // Predicated region
    $region10: #{tpu_custom_call.1} parent=1 // pred_check
      _
    $region11: #{tpu_custom_call.1} parent=1 // pred_check_branch
      %27 = sbr.rel (0) target = $region13
    $region12: #{tpu_custom_call.1} parent=1 // pred_region
      _
    $region13: #{tpu_custom_call.1} parent=1 // pred_fallthru
      _
    // Predicated region
    $region14: #{tpu_custom_call.1} parent=1 // pred_check
      _
    $region15: #{tpu_custom_call.1} parent=1 // pred_check_branch
      %29 = sbr.rel (0) target = $region17
    $region16: #{tpu_custom_call.1} parent=1 // pred_region
      _
    $region17: #{tpu_custom_call.1} parent=1 // pred_fallthru
      _
    // Predicated region
    $region18: #{tpu_custom_call.1} parent=1 // pred_check
      _
    $region19: #{tpu_custom_call.1} parent=1 // pred_check_branch
      %31 = sbr.rel (0) target = $region21
    $region20: #{tpu_custom_call.1} parent=1 // pred_region
      _
    $region21: #{tpu_custom_call.1} parent=1 // pred_fallthru
      _
    // Predicated region
    $region22: #{tpu_custom_call.1} parent=1 // pred_check
      _
    $region23: #{tpu_custom_call.1} parent=1 // pred_check_branch
      %33 = sbr.rel (0) target = $region25
    $region24: #{tpu_custom_call.1} parent=1 // pred_region
      _
    $region25: #{tpu_custom_call.1} parent=1 // pred_fallthru
      _
    // Predicated region
    $region26: #{tpu_custom_call.1} parent=1 // pred_check
      _
    $region27: #{tpu_custom_call.1} parent=1 // pred_check_branch
      %35 = sbr.rel (0) target = $region29
    $region28: #{tpu_custom_call.1} parent=1 // pred_region
      _
    $region29: #{tpu_custom_call.1} parent=1 // pred_fallthru
      _
    // Predicated region
    $region30: #{tpu_custom_call.1} parent=1 // pred_check
      _
    $region31: #{tpu_custom_call.1} parent=1 // pred_check_branch
      %37 = sbr.rel (0) target = $region33
    $region32: #{tpu_custom_call.1} parent=1 // pred_region
      %38 = dma.done [#allocation3], 128
    $region33: #{tpu_custom_call.1} parent=1 // pred_fallthru
      _
    %v39 = vld [vmem:[#allocation2] sm:$0xff]
    %v40 = vld [vmem:[%s1] sm:$0xff]
    %v41 = vld [vmem:[%s1 + $0x8] sm:$0xff]
    %v42 = vld [vmem:[%s3] sm:$0x1]
    %v43 = vlaneseq
    %v44 = vshrl.u32 %v43, 7
    %v45 = vsub.s32 0, %v44
    %v46 = vrot.slane %v42, %v45
    %vm47 = vcmask 130048
    %v49 = vsel %vm47, %v39, 0
    %51 = vmatprep.subr.mxu0 0.0
    %52 = vmatpush1.msra.mxu0 %v40
    %53 = vmatprep.subr.mxu0 0.0
    %54 = vmatpush1.msra.mxu0 %v41
    %55 = vmatprep.subr.mxu0 0.0
    %56 = vmatpush1.msra.mxu0 0.0
    %57 = vmatprep.subr.mxu0 0.0
    %58 = vmatpush1.msra.mxu0 0.0
    %59 = vmatprep.subr.mxu0 0.0
    %60 = vmatpush1.msra.mxu0 0.0
    %61 = vmatprep.subr.mxu0 0.0
    %62 = vmatpush1.msra.mxu0 0.0
    %63 = vmatprep.subr.mxu0 0.0
    %64 = vmatpush1.msra.mxu0 0.0
    %65 = vmatprep.subr.mxu0 0.0
    %66 = vmatpush1.msra.mxu0 0.0
    %67 = vmatprep.subr.mxu0 0.0
    %68 = vmatpush1.msra.mxu0 0.0
    %69 = vmatprep.subr.mxu0 0.0
    %70 = vmatpush1.msra.mxu0 0.0
    %71 = vmatprep.subr.mxu0 0.0
    %72 = vmatpush1.msra.mxu0 0.0
    %73 = vmatprep.subr.mxu0 0.0
    %74 = vmatpush1.msra.mxu0 0.0
    %75 = vmatprep.subr.mxu0 0.0
    %76 = vmatpush1.msra.mxu0 0.0
    %77 = vmatprep.subr.mxu0 0.0
    %78 = vmatpush1.msra.mxu0 0.0
    %79 = vmatprep.subr.mxu0 0.0
    %80 = vmatpush1.msra.mxu0 0.0
    %81 = vmatprep.subr.mxu0 0.0
    %82 = vmatpush1.msra.mxu0 0.0
    %83 = vmatprep.subr.mxu0 0.0
    %84 = vmatpush1.msra.mxu0 0.0
    %85 = vmatprep.subr.mxu0 0.0
    %86 = vmatpush1.msra.mxu0 0.0
    %87 = vmatprep.subr.mxu0 0.0
    %88 = vmatpush1.msra.mxu0 0.0
    %89 = vmatprep.subr.mxu0 0.0
    %90 = vmatpush1.msra.mxu0 0.0
    %91 = vmatprep.subr.mxu0 0.0
    %92 = vmatpush1.msra.mxu0 0.0
    %93 = vmatprep.subr.mxu0 0.0
    %94 = vmatpush1.msra.mxu0 0.0
    %95 = vmatprep.subr.mxu0 0.0
    %96 = vmatpush1.msra.mxu0 0.0
    %97 = vmatprep.subr.mxu0 0.0
    %98 = vmatpush1.msra.mxu0 0.0
    %99 = vmatprep.subr.mxu0 0.0
    %100 = vmatpush1.msra.mxu0 0.0
    %101 = vmatprep.subr.mxu0 0.0
    %102 = vmatpush1.msra.mxu0 0.0
    %103 = vmatprep.subr.mxu0 0.0
    %104 = vmatpush1.msra.mxu0 0.0
    %105 = vmatprep.subr.mxu0 0.0
    %106 = vmatpush1.msra.mxu0 0.0
    %107 = vmatprep.subr.mxu0 0.0
    %108 = vmatpush1.msra.mxu0 0.0
    %109 = vmatprep.subr.mxu0 0.0
    %110 = vmatpush1.msra.mxu0 0.0
    %111 = vmatprep.subr.mxu0 0.0
    %112 = vmatpush1.msra.mxu0 0.0
    %113 = vmatprep.subr.mxu0 0.0
    %114 = vmatpush1.msra.mxu0 0.0
    %115 = vmatprep.mubr.f32.mxu0 0.0
    %116 = vmatmul.mubr.f32.gmra.mrb[0].mxu0 %v49
    %v117 = vpop.f32.mrb[0].mxu0
    %v118 = vadd.f32 %v46, %v117
    %v119 = vpop.f32.mrb[0].mxu0
    %120 = vdwg.mxu0
    %v121 = vmax.f32 %v118, 0.0
    %v122 = vld [vmem:[%s2] sm:$0xff]
    %v123 = vld [vmem:[%s2 + $0x8] sm:$0xff]
    %v124 = vld [vmem:[%s2 + $0x10] sm:$0xff]
    %v125 = vld [vmem:[%s2 + $0x18] sm:$0xff]
    %v126 = vld [vmem:[%s2 + $0x20] sm:$0xff]
    %v127 = vld [vmem:[%s2 + $0x28] sm:$0xff]
    %v128 = vld [vmem:[%s2 + $0x30] sm:$0xff]
    %v129 = vld [vmem:[%s2 + $0x38] sm:$0xff]
    %v130 = vld [vmem:[%s2 + $0x40] sm:$0xff]
    %v131 = vld [vmem:[%s2 + $0x48] sm:$0xff]
    %v132 = vld [vmem:[%s2 + $0x50] sm:$0xff]
    %v133 = vld [vmem:[%s2 + $0x58] sm:$0xff]
    %v134 = vld [vmem:[%s2 + $0x60] sm:$0xff]
    %v135 = vld [vmem:[%s2 + $0x68] sm:$0xff]
    %v136 = vld [vmem:[%s2 + $0x70] sm:$0xff]
    %v137 = vld [vmem:[%s2 + $0x78] sm:$0xff]
    %v138 = vld [vmem:[%s3 + $0x1] sm:$0x1]
    %v139 = vlaneseq
    %v140 = vshrl.u32 %v139, 7
    %v141 = vsub.s32 0, %v140
    %v142 = vrot.slane %v138, %v141
    %143 = vmatprep.subr.mxu0 0.0
    %144 = vmatpush1.msra.mxu0 %v122
    %145 = vmatprep.subr.mxu0 0.0
    %146 = vmatpush1.msra.mxu0 %v123
    %147 = vmatprep.subr.mxu0 0.0
    %148 = vmatpush1.msra.mxu0 %v124
    %149 = vmatprep.subr.mxu0 0.0
    %150 = vmatpush1.msra.mxu0 %v125
    %151 = vmatprep.subr.mxu0 0.0
    %152 = vmatpush1.msra.mxu0 %v126
    %153 = vmatprep.subr.mxu0 0.0
    %154 = vmatpush1.msra.mxu0 %v127
    %155 = vmatprep.subr.mxu0 0.0
    %156 = vmatpush1.msra.mxu0 %v128
    %157 = vmatprep.subr.mxu0 0.0
    %158 = vmatpush1.msra.mxu0 %v129
    %159 = vmatprep.subr.mxu0 0.0
    %160 = vmatpush1.msra.mxu0 %v130
    %161 = vmatprep.subr.mxu0 0.0
    %162 = vmatpush1.msra.mxu0 %v131
    %163 = vmatprep.subr.mxu0 0.0
    %164 = vmatpush1.msra.mxu0 %v132
    %165 = vmatprep.subr.mxu0 0.0
    %166 = vmatpush1.msra.mxu0 %v133
    %167 = vmatprep.subr.mxu0 0.0
    %168 = vmatpush1.msra.mxu0 %v134
    %169 = vmatprep.subr.mxu0 0.0
    %170 = vmatpush1.msra.mxu0 %v135
    %171 = vmatprep.subr.mxu0 0.0
    %172 = vmatpush1.msra.mxu0 %v136
    %173 = vmatprep.subr.mxu0 0.0
    %174 = vmatpush1.msra.mxu0 %v137
    %175 = vmatprep.subr.mxu0 0.0
    %176 = vmatpush1.msra.mxu0 0.0
    %177 = vmatprep.subr.mxu0 0.0
    %178 = vmatpush1.msra.mxu0 0.0
    %179 = vmatprep.subr.mxu0 0.0
    %180 = vmatpush1.msra.mxu0 0.0
    %181 = vmatprep.subr.mxu0 0.0
    %182 = vmatpush1.msra.mxu0 0.0
    %183 = vmatprep.subr.mxu0 0.0
    %184 = vmatpush1.msra.mxu0 0.0
    %185 = vmatprep.subr.mxu0 0.0
    %186 = vmatpush1.msra.mxu0 0.0
    %187 = vmatprep.subr.mxu0 0.0
    %188 = vmatpush1.msra.mxu0 0.0
    %189 = vmatprep.subr.mxu0 0.0
    %190 = vmatpush1.msra.mxu0 0.0
    %191 = vmatprep.subr.mxu0 0.0
    %192 = vmatpush1.msra.mxu0 0.0
    %193 = vmatprep.subr.mxu0 0.0
    %194 = vmatpush1.msra.mxu0 0.0
    %195 = vmatprep.subr.mxu0 0.0
    %196 = vmatpush1.msra.mxu0 0.0
    %197 = vmatprep.subr.mxu0 0.0
    %198 = vmatpush1.msra.mxu0 0.0
    %199 = vmatprep.subr.mxu0 0.0
    %200 = vmatpush1.msra.mxu0 0.0
    %201 = vmatprep.subr.mxu0 0.0
    %202 = vmatpush1.msra.mxu0 0.0
    %203 = vmatprep.subr.mxu0 0.0
    %204 = vmatpush1.msra.mxu0 0.0
    %205 = vmatprep.subr.mxu0 0.0
    %206 = vmatpush1.msra.mxu0 0.0
    %207 = vmatprep.mubr.f32.mxu0 0.0
    %208 = vmatmul.mubr.f32.gmra.mrb[0].mxu0 %v121
    %v209 = vpop.f32.mrb[0].mxu0
    %v210 = vadd.f32 %v142, %v209
    %v211 = vpop.f32.mrb[0].mxu0
    %212 = vdwg.mxu0
    %v213 = vmax.f32 %v210, 0.0
    %v214 = vld [vmem:[%s4] sm:$0xff]
    %v215 = vld [vmem:[%s4 + $0x8] sm:$0xff]
    %v216 = vld [vmem:[%s4 + $0x10] sm:$0xff]
    %v217 = vld [vmem:[%s4 + $0x18] sm:$0xff]
    %v218 = vld [vmem:[%s4 + $0x20] sm:$0xff]
    %v219 = vld [vmem:[%s4 + $0x28] sm:$0xff]
    %v220 = vld [vmem:[%s4 + $0x30] sm:$0xff]
    %v221 = vld [vmem:[%s4 + $0x38] sm:$0xff]
    %v222 = vld [vmem:[%s4 + $0x40] sm:$0xff]
    %v223 = vld [vmem:[%s4 + $0x48] sm:$0xff]
    %v224 = vld [vmem:[%s4 + $0x50] sm:$0xff]
    %v225 = vld [vmem:[%s4 + $0x58] sm:$0xff]
    %v226 = vld [vmem:[%s4 + $0x60] sm:$0xff]
    %v227 = vld [vmem:[%s4 + $0x68] sm:$0xff]
    %v228 = vld [vmem:[%s4 + $0x70] sm:$0xff]
    %v229 = vld [vmem:[%s4 + $0x78] sm:$0xff]
    %v230 = vld [vmem:[%s5] sm:$0x1]
    %v232 = vlaneseq
    %v233 = vshrl.u32 %v232, 7
    %v234 = vsub.s32 0, %v233
    %v235 = vrot.slane %v230, %v234
    %237 = vmatprep.subr.mxu0 0.0
    %238 = vmatpush1.msra.mxu0 %v214
    %239 = vmatprep.subr.mxu0 0.0
    %240 = vmatpush1.msra.mxu0 %v215
    %241 = vmatprep.subr.mxu0 0.0
    %242 = vmatpush1.msra.mxu0 %v216
    %243 = vmatprep.subr.mxu0 0.0
    %244 = vmatpush1.msra.mxu0 %v217
    %245 = vmatprep.subr.mxu0 0.0
    %246 = vmatpush1.msra.mxu0 %v218
    %247 = vmatprep.subr.mxu0 0.0
    %248 = vmatpush1.msra.mxu0 %v219
    %249 = vmatprep.subr.mxu0 0.0
    %250 = vmatpush1.msra.mxu0 %v220
    %251 = vmatprep.subr.mxu0 0.0
    %252 = vmatpush1.msra.mxu0 %v221
    %253 = vmatprep.subr.mxu0 0.0
    %254 = vmatpush1.msra.mxu0 %v222
    %255 = vmatprep.subr.mxu0 0.0
    %256 = vmatpush1.msra.mxu0 %v223
    %257 = vmatprep.subr.mxu0 0.0
    %258 = vmatpush1.msra.mxu0 %v224
    %259 = vmatprep.subr.mxu0 0.0
    %260 = vmatpush1.msra.mxu0 %v225
    %261 = vmatprep.subr.mxu0 0.0
    %262 = vmatpush1.msra.mxu0 %v226
    %263 = vmatprep.subr.mxu0 0.0
    %264 = vmatpush1.msra.mxu0 %v227
    %265 = vmatprep.subr.mxu0 0.0
    %266 = vmatpush1.msra.mxu0 %v228
    %267 = vmatprep.subr.mxu0 0.0
    %268 = vmatpush1.msra.mxu0 %v229
    %269 = vmatprep.subr.mxu0 0.0
    %270 = vmatpush1.msra.mxu0 0.0
    %271 = vmatprep.subr.mxu0 0.0
    %272 = vmatpush1.msra.mxu0 0.0
    %273 = vmatprep.subr.mxu0 0.0
    %274 = vmatpush1.msra.mxu0 0.0
    %275 = vmatprep.subr.mxu0 0.0
    %276 = vmatpush1.msra.mxu0 0.0
    %277 = vmatprep.subr.mxu0 0.0
    %278 = vmatpush1.msra.mxu0 0.0
    %279 = vmatprep.subr.mxu0 0.0
    %280 = vmatpush1.msra.mxu0 0.0
    %281 = vmatprep.subr.mxu0 0.0
    %282 = vmatpush1.msra.mxu0 0.0
    %283 = vmatprep.subr.mxu0 0.0
    %284 = vmatpush1.msra.mxu0 0.0
    %285 = vmatprep.subr.mxu0 0.0
    %286 = vmatpush1.msra.mxu0 0.0
    %287 = vmatprep.subr.mxu0 0.0
    %288 = vmatpush1.msra.mxu0 0.0
    %289 = vmatprep.subr.mxu0 0.0
    %290 = vmatpush1.msra.mxu0 0.0
    %291 = vmatprep.subr.mxu0 0.0
    %292 = vmatpush1.msra.mxu0 0.0
    %293 = vmatprep.subr.mxu0 0.0
    %294 = vmatpush1.msra.mxu0 0.0
    %295 = vmatprep.subr.mxu0 0.0
    %296 = vmatpush1.msra.mxu0 0.0
    %297 = vmatprep.subr.mxu0 0.0
    %298 = vmatpush1.msra.mxu0 0.0
    %299 = vmatprep.subr.mxu0 0.0
    %300 = vmatpush1.msra.mxu0 0.0
    %301 = vmatprep.mubr.f32.mxu0 0.0
    %302 = vmatmul.mubr.f32.gmra.mrb[0].mxu0 %v213
    %v303 = vpop.f32.mrb[0].mxu0
    %v304 = vadd.f32 %v235, %v303
    %v305 = vpop.f32.mrb[0].mxu0
    %306 = vdwg.mxu0
    %v307 = vxor.u32 %v304, 2147483648
    %v308 = vmul.f32 %v307, 1.442695
    %v309 = vpow.pop %v308
    %v310 = vadd.f32 %v309, 1.0
    %v311 = vrcp.pop %v310
    %v312 = vmul.f32 1.0, %v311
    %v313 = vld [vmem:[%s6] sm:$0xff]
    %315 = vset.pattern.permute.xlu0 0
    %316 = vperm.xlu0 %315, %v313
    %v317 = vpop.permute.xlu0 %316
    %v319 = vmul.f32 %v312, %v317
    %vm320 = vcmask 64512
    %321 = vst.msk [vmem:[#allocation5] sm:$0xff] %vm320, %v319
    // Predicated region
    $region34: #{tpu_custom_call.1} parent=1 // pred_check
      _
    $region35: #{tpu_custom_call.1} parent=1 // pred_check_branch
      %323 = sbr.rel (0) target = $region37
    $region36: #{tpu_custom_call.1} parent=1 // pred_region
      %s325 = ssub.s32 128, 128
      %326 = vsyncadd [#allocation4], %s325
      %s328 = sshll.u32 [#allocation5], 4
      %s329 = int_to_ptr.vmem [resolvable:$true] %s328
      %331 = dma.vmem_to_hbm [thread:$0]  %s329, 128, %s7, [#allocation4]
    $region37: #{tpu_custom_call.1} parent=1 // pred_fallthru
      _
    // Predicated region
    $region38: #{tpu_custom_call.1} parent=1 // pred_check
      _
    $region39: #{tpu_custom_call.1} parent=1 // pred_check_branch
      %333 = sbr.rel (0) target = $region41
    $region40: #{tpu_custom_call.1} parent=1 // pred_region
      %334 = dma.done [#allocation4], 128
    $region41: #{tpu_custom_call.1} parent=1 // pred_fallthru
      _
    %335 = vsyncpa [#allocation3], 1
    %336 = vsyncpa [#allocation4], 1

// kernel: tpu_custom_call.1
$region0: #{tpu_custom_call.1}
  #allocation0 [shape = 'u32[]', space=smem, size = 0x4, offset = 0x4, fixed_abs, tag = 'smem constant byte address 0x4 - core index']
  #allocation1 [shape = 'u32[144,128]{1,0:T(1,128)}', space=vmem, size = 0x12000, scoped, tag = 'internal scratch']
  %s0 = inlined_call_operand.hbm [shape: f32[8,16], index: 0, kind: input, shape index: {}]
  %s1 = inlined_call_operand.vmem [shape: f32[16,128], index: 1, kind: input, shape index: {}]
  %s2 = inlined_call_operand.vmem [shape: f32[128,128], index: 2, kind: input, shape index: {}]
  %s3 = inlined_call_operand.vmem [shape: f32[2,128], index: 3, kind: input, shape index: {}]
  %s4 = inlined_call_operand.vmem [shape: f32[128,8], index: 4, kind: input, shape index: {}]
  %s5 = inlined_call_operand.vmem [shape: f32[1,8], index: 5, kind: input, shape index: {}]
  %s6 = inlined_call_operand.vmem [shape: f32[8,1], index: 6, kind: input, shape index: {}]
  %s7 = inlined_call_operand.hbm [shape: f32[8,8], index: 7, kind: output, shape index: {}]
  %s8 = sld [smem:[#allocation0]]
  $region42: #{tpu_custom_call.1} parent=0
    _
  %s10 = ssub.s32 1, %s8
  %s11 = scalar_select 0, %s10, %s8
  $region1: #{tpu_custom_call.1} parent=0
    #allocation2 [shape = 'u8[4096]{0}', space=vmem, size = 0x1000, scoped, tag = 'input window, operand 0, single buffered']
    #allocation3 [shape = 's32[1]{0}', space=sflag, size = 0x4, scoped, tag = 'scoped memory for tpu_custom_call.1']
    #allocation4 [shape = 's32[1]{0}', space=sflag, size = 0x4, scoped, tag = 'scoped memory for tpu_custom_call.1']
    #allocation5 [shape = 'u8[4096]{0}', space=vmem, size = 0x1000, scoped, tag = 'output window, operand 0, single buffered']
    %12 = vsyncpa [#allocation3], 0
    %13 = vsyncpa [#allocation4], 0
    // Predicated region
    $region2: #{tpu_custom_call.1} parent=1 // pred_check
      _
    $region3: #{tpu_custom_call.1} parent=1 // pred_check_branch
      %15 = sbr.rel (0) target = $region5
    $region4: #{tpu_custom_call.1} parent=1 // pred_region
      %s17 = ssub.s32 128, 128
      %18 = vsyncadd [#allocation3], %s17
      %s20 = sshll.u32 [#allocation2], 4
      %s21 = int_to_ptr.vmem [resolvable:$true] %s20
      %23 = dma.hbm_to_vmem [thread:$0]  %s0, 128, %s21, [#allocation3]
    $region5: #{tpu_custom_call.1} parent=1 // pred_fallthru
      _
    // Predicated region
    $region6: #{tpu_custom_call.1} parent=1 // pred_check
      _
    $region7: #{tpu_custom_call.1} parent=1 // pred_check_branch
      %25 = sbr.rel (0) target = $region9
    $region8: #{tpu_custom_call.1} parent=1 // pred_region
      _
    $region9: #{tpu_custom_call.1} parent=1 // pred_fallthru
      _
    // Predicated region
    $region10: #{tpu_custom_call.1} parent=1 // pred_check
      _
    $region11: #{tpu_custom_call.1} parent=1 // pred_check_branch
      %27 = sbr.rel (0) target = $region13
    $region12: #{tpu_custom_call.1} parent=1 // pred_region
      _
    $region13: #{tpu_custom_call.1} parent=1 // pred_fallthru
      _
    // Predicated region
    $region14: #{tpu_custom_call.1} parent=1 // pred_check
      _
    $region15: #{tpu_custom_call.1} parent=1 // pred_check_branch
      %29 = sbr.rel (0) target = $region17
    $region16: #{tpu_custom_call.1} parent=1 // pred_region
      _
    $region17: #{tpu_custom_call.1} parent=1 // pred_fallthru
      _
    // Predicated region
    $region18: #{tpu_custom_call.1} parent=1 // pred_check
      _
    $region19: #{tpu_custom_call.1} parent=1 // pred_check_branch
      %31 = sbr.rel (0) target = $region21
    $region20: #{tpu_custom_call.1} parent=1 // pred_region
      _
    $region21: #{tpu_custom_call.1} parent=1 // pred_fallthru
      _
    // Predicated region
    $region22: #{tpu_custom_call.1} parent=1 // pred_check
      _
    $region23: #{tpu_custom_call.1} parent=1 // pred_check_branch
      %33 = sbr.rel (0) target = $region25
    $region24: #{tpu_custom_call.1} parent=1 // pred_region
      _
    $region25: #{tpu_custom_call.1} parent=1 // pred_fallthru
      _
    // Predicated region
    $region26: #{tpu_custom_call.1} parent=1 // pred_check
      _
    $region27: #{tpu_custom_call.1} parent=1 // pred_check_branch
      %35 = sbr.rel (0) target = $region29
    $region28: #{tpu_custom_call.1} parent=1 // pred_region
      _
    $region29: #{tpu_custom_call.1} parent=1 // pred_fallthru
      _
    // Predicated region
    $region30: #{tpu_custom_call.1} parent=1 // pred_check
      _
    $region31: #{tpu_custom_call.1} parent=1 // pred_check_branch
      %37 = sbr.rel (0) target = $region33
    $region32: #{tpu_custom_call.1} parent=1 // pred_region
      %38 = dma.done [#allocation3], 128
    $region33: #{tpu_custom_call.1} parent=1 // pred_fallthru
      _
    %v39 = vld [vmem:[#allocation2] sm:$0xff]
    %v40 = vld [vmem:[%s1] sm:$0xff]
    %v41 = vld [vmem:[%s1 + $0x8] sm:$0xff]
    %v42 = vld [vmem:[%s3] sm:$0x1]
    %v43 = vlaneseq
    %v44 = vshrl.u32 %v43, 7
    %v45 = vsub.s32 0, %v44
    %v46 = vrot.slane %v42, %v45
    %vm47 = vcmask 130048
    %v49 = vsel %vm47, %v39, 0
    %51 = vmatprep.subr.mxu0 0.0
    %52 = vmatpush1.msra.mxu0 %v40
    %53 = vmatprep.subr.mxu0 0.0
    %54 = vmatpush1.msra.mxu0 %v41
    %55 = vmatprep.subr.mxu0 0.0
    %56 = vmatpush1.msra.mxu0 0.0
    %57 = vmatprep.subr.mxu0 0.0
    %58 = vmatpush1.msra.mxu0 0.0
    %59 = vmatprep.subr.mxu0 0.0
    %60 = vmatpush1.msra.mxu0 0.0
    %61 = vmatprep.subr.mxu0 0.0
    %62 = vmatpush1.msra.mxu0 0.0
    %63 = vmatprep.subr.mxu0 0.0
    %64 = vmatpush1.msra.mxu0 0.0
    %65 = vmatprep.subr.mxu0 0.0
    %66 = vmatpush1.msra.mxu0 0.0
    %67 = vmatprep.subr.mxu0 0.0
    %68 = vmatpush1.msra.mxu0 0.0
    %69 = vmatprep.subr.mxu0 0.0
    %70 = vmatpush1.msra.mxu0 0.0
    %71 = vmatprep.subr.mxu0 0.0
    %72 = vmatpush1.msra.mxu0 0.0
    %73 = vmatprep.subr.mxu0 0.0
    %74 = vmatpush1.msra.mxu0 0.0
    %75 = vmatprep.subr.mxu0 0.0
    %76 = vmatpush1.msra.mxu0 0.0
    %77 = vmatprep.subr.mxu0 0.0
    %78 = vmatpush1.msra.mxu0 0.0
    %79 = vmatprep.subr.mxu0 0.0
    %80 = vmatpush1.msra.mxu0 0.0
    %81 = vmatprep.subr.mxu0 0.0
    %82 = vmatpush1.msra.mxu0 0.0
    %83 = vmatprep.subr.mxu0 0.0
    %84 = vmatpush1.msra.mxu0 0.0
    %85 = vmatprep.subr.mxu0 0.0
    %86 = vmatpush1.msra.mxu0 0.0
    %87 = vmatprep.subr.mxu0 0.0
    %88 = vmatpush1.msra.mxu0 0.0
    %89 = vmatprep.subr.mxu0 0.0
    %90 = vmatpush1.msra.mxu0 0.0
    %91 = vmatprep.subr.mxu0 0.0
    %92 = vmatpush1.msra.mxu0 0.0
    %93 = vmatprep.subr.mxu0 0.0
    %94 = vmatpush1.msra.mxu0 0.0
    %95 = vmatprep.subr.mxu0 0.0
    %96 = vmatpush1.msra.mxu0 0.0
    %97 = vmatprep.subr.mxu0 0.0
    %98 = vmatpush1.msra.mxu0 0.0
    %99 = vmatprep.subr.mxu0 0.0
    %100 = vmatpush1.msra.mxu0 0.0
    %101 = vmatprep.subr.mxu0 0.0
    %102 = vmatpush1.msra.mxu0 0.0
    %103 = vmatprep.subr.mxu0 0.0
    %104 = vmatpush1.msra.mxu0 0.0
    %105 = vmatprep.subr.mxu0 0.0
    %106 = vmatpush1.msra.mxu0 0.0
    %107 = vmatprep.subr.mxu0 0.0
    %108 = vmatpush1.msra.mxu0 0.0
    %109 = vmatprep.subr.mxu0 0.0
    %110 = vmatpush1.msra.mxu0 0.0
    %111 = vmatprep.subr.mxu0 0.0
    %112 = vmatpush1.msra.mxu0 0.0
    %113 = vmatprep.subr.mxu0 0.0
    %114 = vmatpush1.msra.mxu0 0.0
    %115 = vmatprep.mubr.f32.mxu0 0.0
    %116 = vmatmul.mubr.f32.gmra.mrb[0].mxu0 %v49
    %v117 = vpop.f32.mrb[0].mxu0
    %v118 = vadd.f32 %v46, %v117
    %v119 = vpop.f32.mrb[0].mxu0
    %120 = vdwg.mxu0
    %v121 = vmax.f32 %v118, 0.0
    %v122 = vld [vmem:[%s2] sm:$0xff]
    %v123 = vld [vmem:[%s2 + $0x8] sm:$0xff]
    %v124 = vld [vmem:[%s2 + $0x10] sm:$0xff]
    %v125 = vld [vmem:[%s2 + $0x18] sm:$0xff]
    %v126 = vld [vmem:[%s2 + $0x20] sm:$0xff]
    %v127 = vld [vmem:[%s2 + $0x28] sm:$0xff]
    %v128 = vld [vmem:[%s2 + $0x30] sm:$0xff]
    %v129 = vld [vmem:[%s2 + $0x38] sm:$0xff]
    %v130 = vld [vmem:[%s2 + $0x40] sm:$0xff]
    %v131 = vld [vmem:[%s2 + $0x48] sm:$0xff]
    %v132 = vld [vmem:[%s2 + $0x50] sm:$0xff]
    %v133 = vld [vmem:[%s2 + $0x58] sm:$0xff]
    %v134 = vld [vmem:[%s2 + $0x60] sm:$0xff]
    %v135 = vld [vmem:[%s2 + $0x68] sm:$0xff]
    %v136 = vld [vmem:[%s2 + $0x70] sm:$0xff]
    %v137 = vld [vmem:[%s2 + $0x78] sm:$0xff]
    %v138 = vld [vmem:[%s3 + $0x1] sm:$0x1]
    %v139 = vlaneseq
    %v140 = vshrl.u32 %v139, 7
    %v141 = vsub.s32 0, %v140
    %v142 = vrot.slane %v138, %v141
    %143 = vmatprep.subr.mxu0 0.0
    %144 = vmatpush1.msra.mxu0 %v122
    %145 = vmatprep.subr.mxu0 0.0
    %146 = vmatpush1.msra.mxu0 %v123
    %147 = vmatprep.subr.mxu0 0.0
    %148 = vmatpush1.msra.mxu0 %v124
    %149 = vmatprep.subr.mxu0 0.0
    %150 = vmatpush1.msra.mxu0 %v125
    %151 = vmatprep.subr.mxu0 0.0
    %152 = vmatpush1.msra.mxu0 %v126
    %153 = vmatprep.subr.mxu0 0.0
    %154 = vmatpush1.msra.mxu0 %v127
    %155 = vmatprep.subr.mxu0 0.0
    %156 = vmatpush1.msra.mxu0 %v128
    %157 = vmatprep.subr.mxu0 0.0
    %158 = vmatpush1.msra.mxu0 %v129
    %159 = vmatprep.subr.mxu0 0.0
    %160 = vmatpush1.msra.mxu0 %v130
    %161 = vmatprep.subr.mxu0 0.0
    %162 = vmatpush1.msra.mxu0 %v131
    %163 = vmatprep.subr.mxu0 0.0
    %164 = vmatpush1.msra.mxu0 %v132
    %165 = vmatprep.subr.mxu0 0.0
    %166 = vmatpush1.msra.mxu0 %v133
    %167 = vmatprep.subr.mxu0 0.0
    %168 = vmatpush1.msra.mxu0 %v134
    %169 = vmatprep.subr.mxu0 0.0
    %170 = vmatpush1.msra.mxu0 %v135
    %171 = vmatprep.subr.mxu0 0.0
    %172 = vmatpush1.msra.mxu0 %v136
    %173 = vmatprep.subr.mxu0 0.0
    %174 = vmatpush1.msra.mxu0 %v137
    %175 = vmatprep.subr.mxu0 0.0
    %176 = vmatpush1.msra.mxu0 0.0
    %177 = vmatprep.subr.mxu0 0.0
    %178 = vmatpush1.msra.mxu0 0.0
    %179 = vmatprep.subr.mxu0 0.0
    %180 = vmatpush1.msra.mxu0 0.0
    %181 = vmatprep.subr.mxu0 0.0
    %182 = vmatpush1.msra.mxu0 0.0
    %183 = vmatprep.subr.mxu0 0.0
    %184 = vmatpush1.msra.mxu0 0.0
    %185 = vmatprep.subr.mxu0 0.0
    %186 = vmatpush1.msra.mxu0 0.0
    %187 = vmatprep.subr.mxu0 0.0
    %188 = vmatpush1.msra.mxu0 0.0
    %189 = vmatprep.subr.mxu0 0.0
    %190 = vmatpush1.msra.mxu0 0.0
    %191 = vmatprep.subr.mxu0 0.0
    %192 = vmatpush1.msra.mxu0 0.0
    %193 = vmatprep.subr.mxu0 0.0
    %194 = vmatpush1.msra.mxu0 0.0
    %195 = vmatprep.subr.mxu0 0.0
    %196 = vmatpush1.msra.mxu0 0.0
    %197 = vmatprep.subr.mxu0 0.0
    %198 = vmatpush1.msra.mxu0 0.0
    %199 = vmatprep.subr.mxu0 0.0
    %200 = vmatpush1.msra.mxu0 0.0
    %201 = vmatprep.subr.mxu0 0.0
    %202 = vmatpush1.msra.mxu0 0.0
    %203 = vmatprep.subr.mxu0 0.0
    %204 = vmatpush1.msra.mxu0 0.0
    %205 = vmatprep.subr.mxu0 0.0
    %206 = vmatpush1.msra.mxu0 0.0
    %207 = vmatprep.mubr.f32.mxu0 0.0
    %208 = vmatmul.mubr.f32.gmra.mrb[0].mxu0 %v121
    %v209 = vpop.f32.mrb[0].mxu0
    %v210 = vadd.f32 %v142, %v209
    %v211 = vpop.f32.mrb[0].mxu0
    %212 = vdwg.mxu0
    %v213 = vmax.f32 %v210, 0.0
    %v214 = vld [vmem:[%s4] sm:$0xff]
    %v215 = vld [vmem:[%s4 + $0x8] sm:$0xff]
    %v216 = vld [vmem:[%s4 + $0x10] sm:$0xff]
    %v217 = vld [vmem:[%s4 + $0x18] sm:$0xff]
    %v218 = vld [vmem:[%s4 + $0x20] sm:$0xff]
    %v219 = vld [vmem:[%s4 + $0x28] sm:$0xff]
    %v220 = vld [vmem:[%s4 + $0x30] sm:$0xff]
    %v221 = vld [vmem:[%s4 + $0x38] sm:$0xff]
    %v222 = vld [vmem:[%s4 + $0x40] sm:$0xff]
    %v223 = vld [vmem:[%s4 + $0x48] sm:$0xff]
    %v224 = vld [vmem:[%s4 + $0x50] sm:$0xff]
    %v225 = vld [vmem:[%s4 + $0x58] sm:$0xff]
    %v226 = vld [vmem:[%s4 + $0x60] sm:$0xff]
    %v227 = vld [vmem:[%s4 + $0x68] sm:$0xff]
    %v228 = vld [vmem:[%s4 + $0x70] sm:$0xff]
    %v229 = vld [vmem:[%s4 + $0x78] sm:$0xff]
    %v230 = vld [vmem:[%s5] sm:$0x1]
    %v232 = vlaneseq
    %v233 = vshrl.u32 %v232, 7
    %v234 = vsub.s32 0, %v233
    %v235 = vrot.slane %v230, %v234
    %237 = vmatprep.subr.mxu0 0.0
    %238 = vmatpush1.msra.mxu0 %v214
    %239 = vmatprep.subr.mxu0 0.0
    %240 = vmatpush1.msra.mxu0 %v215
    %241 = vmatprep.subr.mxu0 0.0
    %242 = vmatpush1.msra.mxu0 %v216
    %243 = vmatprep.subr.mxu0 0.0
    %244 = vmatpush1.msra.mxu0 %v217
    %245 = vmatprep.subr.mxu0 0.0
    %246 = vmatpush1.msra.mxu0 %v218
    %247 = vmatprep.subr.mxu0 0.0
    %248 = vmatpush1.msra.mxu0 %v219
    %249 = vmatprep.subr.mxu0 0.0
    %250 = vmatpush1.msra.mxu0 %v220
    %251 = vmatprep.subr.mxu0 0.0
    %252 = vmatpush1.msra.mxu0 %v221
    %253 = vmatprep.subr.mxu0 0.0
    %254 = vmatpush1.msra.mxu0 %v222
    %255 = vmatprep.subr.mxu0 0.0
    %256 = vmatpush1.msra.mxu0 %v223
    %257 = vmatprep.subr.mxu0 0.0
    %258 = vmatpush1.msra.mxu0 %v224
    %259 = vmatprep.subr.mxu0 0.0
    %260 = vmatpush1.msra.mxu0 %v225
    %261 = vmatprep.subr.mxu0 0.0
    %262 = vmatpush1.msra.mxu0 %v226
    %263 = vmatprep.subr.mxu0 0.0
    %264 = vmatpush1.msra.mxu0 %v227
    %265 = vmatprep.subr.mxu0 0.0
    %266 = vmatpush1.msra.mxu0 %v228
    %267 = vmatprep.subr.mxu0 0.0
    %268 = vmatpush1.msra.mxu0 %v229
    %269 = vmatprep.subr.mxu0 0.0
    %270 = vmatpush1.msra.mxu0 0.0
    %271 = vmatprep.subr.mxu0 0.0
    %272 = vmatpush1.msra.mxu0 0.0
    %273 = vmatprep.subr.mxu0 0.0
    %274 = vmatpush1.msra.mxu0 0.0
    %275 = vmatprep.subr.mxu0 0.0
    %276 = vmatpush1.msra.mxu0 0.0
    %277 = vmatprep.subr.mxu0 0.0
    %278 = vmatpush1.msra.mxu0 0.0
    %279 = vmatprep.subr.mxu0 0.0
    %280 = vmatpush1.msra.mxu0 0.0
    %281 = vmatprep.subr.mxu0 0.0
    %282 = vmatpush1.msra.mxu0 0.0
    %283 = vmatprep.subr.mxu0 0.0
    %284 = vmatpush1.msra.mxu0 0.0
    %285 = vmatprep.subr.mxu0 0.0
    %286 = vmatpush1.msra.mxu0 0.0
    %287 = vmatprep.subr.mxu0 0.0
    %288 = vmatpush1.msra.mxu0 0.0
    %289 = vmatprep.subr.mxu0 0.0
    %290 = vmatpush1.msra.mxu0 0.0
    %291 = vmatprep.subr.mxu0 0.0
    %292 = vmatpush1.msra.mxu0 0.0
    %293 = vmatprep.subr.mxu0 0.0
    %294 = vmatpush1.msra.mxu0 0.0
    %295 = vmatprep.subr.mxu0 0.0
    %296 = vmatpush1.msra.mxu0 0.0
    %297 = vmatprep.subr.mxu0 0.0
    %298 = vmatpush1.msra.mxu0 0.0
    %299 = vmatprep.subr.mxu0 0.0
    %300 = vmatpush1.msra.mxu0 0.0
    %301 = vmatprep.mubr.f32.mxu0 0.0
    %302 = vmatmul.mubr.f32.gmra.mrb[0].mxu0 %v213
    %v303 = vpop.f32.mrb[0].mxu0
    %v304 = vadd.f32 %v235, %v303
    %v305 = vpop.f32.mrb[0].mxu0
    %306 = vdwg.mxu0
    %v307 = vxor.u32 %v304, 2147483648
    %v308 = vmul.f32 %v307, 1.442695
    %v309 = vpow.pop %v308
    %v310 = vadd.f32 %v309, 1.0
    %v311 = vrcp.pop %v310
    %v312 = vmul.f32 1.0, %v311
    %v313 = vld [vmem:[%s6] sm:$0xff]
    %315 = vset.pattern.permute.xlu0 0
    %316 = vperm.xlu0 %315, %v313
    %v317 = vpop.permute.xlu0 %316
    %v319 = vmul.f32 %v312, %v317
    %vm320 = vcmask 64512
    %321 = vst.msk [vmem:[#allocation5] sm:$0xff] %vm320, %v319
    // Predicated region
    $region34: #{tpu_custom_call.1} parent=1 // pred_check
      _
    $region35: #{tpu_custom_call.1} parent=1 // pred_check_branch
      %323 = sbr.rel (0) target = $region37
    $region36: #{tpu_custom_call.1} parent=1 // pred_region
      %s325 = ssub.s32 128, 128
      %326 = vsyncadd [#allocation4], %s325
      %s328 = sshll.u32 [#allocation5], 4
      %s329 = int_to_ptr.vmem [resolvable:$true] %s328
      %331 = dma.vmem_to_hbm [thread:$0]  %s329, 128, %s7, [#allocation4]
    $region37: #{tpu_custom_call.1} parent=1 // pred_fallthru
      _
    // Predicated region
    $region38: #{tpu_custom_call.1} parent=1 // pred_check
      _
    $region39: #{tpu_custom_call.1} parent=1 // pred_check_branch
      %333 = sbr.rel (0) target = $region41
    $region40: #{tpu_custom_call.1} parent=1 // pred_region
      %334 = dma.done [#allocation4], 128
    $region41: #{tpu_custom_call.1} parent=1 // pred_fallthru
      _
    %335 = vsyncpa [#allocation3], 1
    %336 = vsyncpa [#allocation4], 1

</llo_original>
